<compile_context>
chip_gen: v6e
topology: v6e:2x2x1
jax: 0.10.0
libtpu: 0.0.40
codegen_flags: <defaults>
</compile_context>

<pallas_src>
import functools
import math

import jax
import jax.numpy as jnp
from jax.experimental import pallas as pl
from jax.experimental.pallas import tpu as pltpu


def _sfrm_kernel(x_ref, a_ref, b_ref, o_ref, *, gate_logit, eps, inv_l, inv_lm1):
    # x block: (block_rows, L); each row is one (batch, group) slab whose
    # lanes are ordered channel-within-group major, then H*W.
    x = x_ref[...]          # (rows, L) f32
    a = a_ref[...]          # (rows, L) = gamma * nsf, expanded along the row
    b = b_ref[...]          # (rows, L) = beta  * nsf, expanded along the row

    # Two-pass statistics per row (torch.std default: unbiased, ddof=1).
    mean = jnp.sum(x, axis=1, keepdims=True) * inv_l            # (rows, 1)
    diff = x - mean
    var = jnp.sum(diff * diff, axis=1, keepdims=True) * inv_lm1  # (rows, 1)
    # Exact reciprocal on the tiny per-row array (keeps the gate comparison
    # numerically tight vs the reference).
    inv_std = 1.0 / (jnp.sqrt(var) + eps)                        # (rows, 1)

    # Fold the affine into per-element coefficients; `diff` is not needed
    # past the reduction:
    #   t = gn_x*nsf + x = x*(1 + a*inv_std) + (b - mean*a*inv_std)
    s = a * inv_std
    t = x * (1.0 + s) + (b - mean * s)

    # sigmoid(t) >= gate  <=>  t >= logit(gate)   (monotonicity); no EUP work.
    o_ref[...] = jnp.where(t >= gate_logit, x, jnp.zeros_like(x))


def _vmem_capacity_bytes():
    try:
        return int(pltpu.get_tpu_info().vmem_capacity_bytes)
    except Exception:
        return 64 * 1024 * 1024  # conservative default (v7x per-TC VMEM)


def _choose_block_rows(M, G, L, itemsize, block_budget_bytes):
    """Pick a row-block size for the (M, L) = (N*G, cpg*H*W) view.

    Constraints:
      * divides M
      * is a multiple of G (blocks cover whole batch elements -> params are
        loaded once) or divides G (blocks stay within a batch element)
      * equals M, or is a multiple of 8 (full sublanes / legal block shape)
    Preference: largest block that fits the VMEM budget.  If that yields a
    single grid step but the data can be split into >=2 blocks of >=1 MiB
    each, split so the grid can shard across TensorCores (v7x megacore).
    """
    cands = []
    for br in range(1, M + 1):
        if M % br:
            continue
        if not (br % G == 0 or G % br == 0):
            continue
        if br != M and br % 8 != 0:
            continue
        cands.append(br)
    # br == M always qualifies (M = N*G), so cands is never empty.
    fitting = [br for br in cands if br * L * itemsize <= block_budget_bytes]
    br = max(fitting) if fitting else min(cands)
    if M // br == 1:
        split = [c for c in cands
                 if M // c >= 2 and c * L * itemsize >= (1 << 20)]
        if split:
            br = max(split)
    return br


def sfrm_pallas(x, gamma, beta, *, group_num=16, eps=1e-10, gate_threshold=0.5,
                block_rows=None):
    """x: (N, C, H, W) f32; gamma, beta: (C, 1, 1) f32 (as in the torch module)."""
    N, C, H, W = x.shape
    G = group_num
    assert C % G == 0 and C >= G
    cpg = C // G
    HW = H * W
    L = cpg * HW
    M = N * G
    assert L > 1, "each group must contain more than one element (unbiased std)"

    # Free view: NCHW contiguous -> one row per (batch, group).
    xg = x.reshape(M, L)

    g_c = gamma.reshape(C).astype(jnp.float32)
    b_c = beta.reshape(C).astype(jnp.float32)
    # normal_scale_factor = |1 - gamma| + beta / sum(|1 - gamma| + beta)
    # (replicates the PyTorch operator precedence: division binds first).
    denom = jnp.sum(jnp.abs(1.0 - g_c) + b_c)
    nsf_c = jnp.abs(1.0 - g_c) + b_c / denom

    # Fold params: gn_x * nsf == (x - mean) * inv_std * (gamma*nsf) + (beta*nsf).
    a_c = (g_c * nsf_c).astype(x.dtype)          # (C,)
    b2_c = (b_c * nsf_c).astype(x.dtype)         # (C,)
    # Expand along H*W so each (G, L) row matches the lane layout of xg.
    a_gl = jnp.broadcast_to(a_c[:, None], (C, HW)).reshape(G, L)
    b_gl = jnp.broadcast_to(b2_c[:, None], (C, HW)).reshape(G, L)

    itemsize = x.dtype.itemsize
    vmem_cap = _vmem_capacity_bytes()
    # Worst-case resident footprint ~ 8 blocks (x, out, A, B, double-buffered).
    block_budget = max(min(vmem_cap * 3 // 4, 96 << 20) // 8, 1 << 20)
    if block_rows is None:
        block_rows = _choose_block_rows(M, G, L, itemsize, block_budget)
    assert M % block_rows == 0
    assert block_rows % G == 0 or G % block_rows == 0

    if block_rows % G == 0:
        # Blocks cover whole batch elements: tile params to one block and use
        # a constant block index so they are DMA'd once and stay resident.
        reps = block_rows // G
        a_p = jnp.tile(a_gl, (reps, 1)) if reps > 1 else a_gl
        b_p = jnp.tile(b_gl, (reps, 1)) if reps > 1 else b_gl
        param_index_map = lambda r: (0, 0)
    else:
        # block_rows divides G: step through the (G, L) param rows.
        n_param_blocks = G // block_rows
        a_p, b_p = a_gl, b_gl
        param_index_map = lambda r: (r % n_param_blocks, 0)

    num_blocks = M // block_rows
    block_bytes = block_rows * L * itemsize
    needed = 8 * block_bytes + (2 << 20)
    vmem_limit = int(min(max(needed, 32 << 20),
                         max(vmem_cap - (4 << 20), 32 << 20)))

    gate = float(gate_threshold)
    if gate <= 0.0:
        gate_logit = -math.inf
    elif gate >= 1.0:
        gate_logit = math.inf
    else:
        gate_logit = math.log(gate / (1.0 - gate))   # exactly 0.0 for gate=0.5

    kernel = functools.partial(
        _sfrm_kernel,
        gate_logit=gate_logit,
        eps=eps,
        inv_l=1.0 / L,
        inv_lm1=1.0 / (L - 1),
    )

    out = pl.pallas_call(
        kernel,
        out_shape=jax.ShapeDtypeStruct((M, L), x.dtype),
        grid=(num_blocks,),
        in_specs=[
            pl.BlockSpec((block_rows, L), lambda r: (r, 0)),
            pl.BlockSpec((block_rows, L), param_index_map),
            pl.BlockSpec((block_rows, L), param_index_map),
        ],
        out_specs=pl.BlockSpec((block_rows, L), lambda r: (r, 0)),
        compiler_params=pltpu.CompilerParams(
            dimension_semantics=("parallel",),
            vmem_limit_bytes=vmem_limit,
        ),
    )(xg, a_p, b_p)

    return out.reshape(N, C, H, W)


def sfrm_reference(x, gamma, beta, *, group_num=16, eps=1e-10, gate_threshold=0.5):
    """Pure-JAX reference mirroring the PyTorch forward semantics."""
    N, C, H, W = x.shape
    xg = x.reshape(N, group_num, -1)
    mean = xg.mean(axis=2, keepdims=True)
    std = jnp.std(xg, axis=2, keepdims=True, ddof=1)   # torch.std is unbiased
    xn = ((xg - mean) / (std + eps)).reshape(N, C, H, W)
    gn_x = xn * gamma[None] + beta[None]
    a = jnp.abs(1.0 - gamma) + beta
    nsf = jnp.abs(1.0 - gamma) + beta / jnp.sum(a)
    new_input = jax.nn.sigmoid(gn_x * nsf[None] + x)
    mask = (new_input >= gate_threshold).astype(x.dtype)
    return mask * x


if __name__ == "__main__":
    # Small shapes consistent with the module: oup_channels=32, group_num=16.
    N, C, H, W = 2, 32, 16, 16
    group_num = 16

    key = jax.random.PRNGKey(0)
    kx, kg = jax.random.split(key)
    x = jax.random.normal(kx, (N, C, H, W), dtype=jnp.float32)
    gamma = jax.random.normal(kg, (C, 1, 1), dtype=jnp.float32)  # torch.randn init
    beta = jnp.zeros((C, 1, 1), dtype=jnp.float32)               # torch.zeros init

    out = sfrm_pallas(x, gamma, beta, group_num=group_num)
    out = jax.block_until_ready(out)

    ref = sfrm_reference(x, gamma, beta, group_num=group_num)
    assert out.shape == (N, C, H, W)
    assert jnp.allclose(out, ref, rtol=1e-5, atol=1e-5), "mismatch vs reference"

    print("KERNEL_OK")
</pallas_src>

<mosaic_0001>
module attributes {stable_mosaic.version = 11 : i64} {
  func.func @_sfrm_kernel(%arg0: i32, %arg1: memref<32x512xf32, #tpu.memory_space<vmem>>, %arg2: memref<32x512xf32, #tpu.memory_space<vmem>>, %arg3: memref<32x512xf32, #tpu.memory_space<vmem>>, %arg4: memref<32x512xf32, #tpu.memory_space<vmem>>) attributes {dimension_semantics = [#tpu.dimension_semantics<parallel>], iteration_bounds = array<i64: 1>, scalar_prefetch = 0 : i64, scratch_operands = 0 : i64, tpu.core_type = #tpu.core_type<tc>, window_params = [{transform_indices = @transform_0, window_bounds = array<i64: 32, 512>}, {pipeline_mode = #tpu.pipeline_mode<synchronous>, transform_indices = @transform_1, window_bounds = array<i64: 32, 512>}, {pipeline_mode = #tpu.pipeline_mode<synchronous>, transform_indices = @transform_2, window_bounds = array<i64: 32, 512>}, {transform_indices = @transform_3, window_bounds = array<i64: 32, 512>}]} {
    %c0 = arith.constant 0 : index
    %c0_0 = arith.constant 0 : index
    %0 = vector.load %arg1[%c0, %c0_0] : memref<32x512xf32, #tpu.memory_space<vmem>>, vector<32x512xf32>
    %c0_1 = arith.constant 0 : index
    %c0_2 = arith.constant 0 : index
    %1 = vector.load %arg2[%c0_1, %c0_2] : memref<32x512xf32, #tpu.memory_space<vmem>>, vector<32x512xf32>
    %c0_3 = arith.constant 0 : index
    %c0_4 = arith.constant 0 : index
    %2 = vector.load %arg3[%c0_3, %c0_4] : memref<32x512xf32, #tpu.memory_space<vmem>>, vector<32x512xf32>
    %cst = arith.constant dense<0.000000e+00> : vector<32xf32>
    %3 = vector.multi_reduction <add>, %0, %cst [1] : vector<32x512xf32> to vector<32xf32>
    %4 = vector.shape_cast %3 : vector<32xf32> to vector<32x1xf32>
    %cst_5 = arith.constant 0.001953125 : f32
    %5 = vector.broadcast %cst_5 : f32 to vector<32x1xf32>
    %6 = arith.mulf %4, %5 : vector<32x1xf32>
    %7 = vector.broadcast %6 : vector<32x1xf32> to vector<32x512xf32>
    %8 = arith.subf %0, %7 : vector<32x512xf32>
    %9 = arith.mulf %8, %8 : vector<32x512xf32>
    %cst_6 = arith.constant dense<0.000000e+00> : vector<32xf32>
    %10 = vector.multi_reduction <add>, %9, %cst_6 [1] : vector<32x512xf32> to vector<32xf32>
    %11 = vector.shape_cast %10 : vector<32xf32> to vector<32x1xf32>
    %cst_7 = arith.constant 0.00195694715 : f32
    %12 = vector.broadcast %cst_7 : f32 to vector<32x1xf32>
    %13 = arith.mulf %11, %12 : vector<32x1xf32>
    %14 = math.sqrt %13 : vector<32x1xf32>
    %cst_8 = arith.constant 1.000000e-10 : f32
    %15 = vector.broadcast %cst_8 : f32 to vector<32x1xf32>
    %16 = arith.addf %14, %15 : vector<32x1xf32>
    %cst_9 = arith.constant 1.000000e+00 : f32
    %17 = vector.broadcast %cst_9 : f32 to vector<32x1xf32>
    %18 = arith.divf %17, %16 : vector<32x1xf32>
    %19 = vector.broadcast %18 : vector<32x1xf32> to vector<32x512xf32>
    %20 = arith.mulf %1, %19 : vector<32x512xf32>
    %cst_10 = arith.constant 1.000000e+00 : f32
    %21 = vector.broadcast %cst_10 : f32 to vector<32x512xf32>
    %22 = arith.addf %21, %20 : vector<32x512xf32>
    %23 = arith.mulf %0, %22 : vector<32x512xf32>
    %24 = vector.broadcast %6 : vector<32x1xf32> to vector<32x512xf32>
    %25 = arith.mulf %24, %20 : vector<32x512xf32>
    %26 = arith.subf %2, %25 : vector<32x512xf32>
    %27 = arith.addf %23, %26 : vector<32x512xf32>
    %cst_11 = arith.constant 0.000000e+00 : f32
    %28 = vector.broadcast %cst_11 : f32 to vector<32x512xf32>
    %29 = arith.cmpf oge, %27, %28 : vector<32x512xf32>
    %cst_12 = arith.constant 0.000000e+00 : f32
    %30 = vector.broadcast %cst_12 : f32 to vector<32x512xf32>
    %31 = arith.select %29, %0, %30 : vector<32x512xi1>, vector<32x512xf32>
    %c0_13 = arith.constant 0 : index
    %c0_14 = arith.constant 0 : index
    %32 = vector.load %arg4[%c0_13, %c0_14] : memref<32x512xf32, #tpu.memory_space<vmem>>, vector<32x512xf32>
    tpu.vector_store %arg4[%c0_13, %c0_14], %31 {strides = array<i32>} : memref<32x512xf32, #tpu.memory_space<vmem>>, vector<32x512xf32>,
    return
  }
  func.func @transform_0(%arg0: i32) -> (i32, i32) {
    %c0_i32 = arith.constant 0 : i32
    %c0_i32_0 = arith.constant 0 : i32
    return %arg0, %c0_i32 : i32, i32
  }
  func.func @transform_1(%arg0: i32) -> (i32, i32) {
    %c0_i32 = arith.constant 0 : i32
    %c0_i32_0 = arith.constant 0 : i32
    %c0_i32_1 = arith.constant 0 : i32
    return %c0_i32, %c0_i32_0 : i32, i32
  }
  func.func @transform_2(%arg0: i32) -> (i32, i32) {
    %c0_i32 = arith.constant 0 : i32
    %c0_i32_0 = arith.constant 0 : i32
    %c0_i32_1 = arith.constant 0 : i32
    return %c0_i32, %c0_i32_0 : i32, i32
  }
  func.func @transform_3(%arg0: i32) -> (i32, i32) {
    %c0_i32 = arith.constant 0 : i32
    %c0_i32_0 = arith.constant 0 : i32
    return %arg0, %c0_i32 : i32, i32
  }
}

</mosaic_0001>

<llo_original>
// kernel: tpu_custom_call.1
$region0: #{tpu_custom_call.1}
  #allocation0 [shape = 'u32[]', space=smem, size = 0x4, offset = 0x4, fixed_abs, tag = 'smem constant byte address 0x4 - core index']
  #allocation1 [shape = 'u32[144,128]{1,0:T(1,128)}', space=vmem, size = 0x12000, scoped, tag = 'internal scratch']
  %s0 = inlined_call_operand.hbm [shape: f32[32,512], index: 0, kind: input, shape index: {}]
  %s1 = inlined_call_operand.hbm [shape: f32[32,512], index: 1, kind: input, shape index: {}]
  %s2 = inlined_call_operand.hbm [shape: f32[32,512], index: 2, kind: input, shape index: {}]
  %s3 = inlined_call_operand.hbm [shape: f32[32,512], index: 3, kind: output, shape index: {}]
  %s4 = sld [smem:[#allocation0]]
  $region34: #{tpu_custom_call.1} parent=0
    _
  %s6 = ssub.s32 1, %s4
  %s7 = scalar_select 0, %s6, %s4
  $region1: #{tpu_custom_call.1} parent=0
    #allocation2 [shape = 'u8[65536]{0}', space=vmem, size = 0x10000, scoped, tag = 'input window, operand 0, single buffered']
    #allocation3 [shape = 's32[1]{0}', space=sflag, size = 0x4, scoped, tag = 'scoped memory for tpu_custom_call.1']
    #allocation4 [shape = 's32[1]{0}', space=sflag, size = 0x4, scoped, tag = 'scoped memory for tpu_custom_call.1']
    #allocation5 [shape = 'u8[65536]{0}', space=vmem, size = 0x10000, scoped, tag = 'input window, operand 1, single buffered']
    #allocation6 [shape = 's32[1]{0}', space=sflag, size = 0x4, scoped, tag = 'scoped memory for tpu_custom_call.1']
    #allocation7 [shape = 'u8[65536]{0}', space=vmem, size = 0x10000, scoped, tag = 'input window, operand 2, single buffered']
    #allocation8 [shape = 'u8[65536]{0}', space=vmem, size = 0x10000, scoped, tag = 'output window, operand 0, single buffered']
    %8 = vsyncpa [#allocation3], 0
    %9 = vsyncpa [#allocation6], 0
    %10 = vsyncpa [#allocation4], 0
    // Predicated region
    $region2: #{tpu_custom_call.1} parent=1 // pred_check
      _
    $region3: #{tpu_custom_call.1} parent=1 // pred_check_branch
      %12 = sbr.rel (0) target = $region5
    $region4: #{tpu_custom_call.1} parent=1 // pred_region
      %s14 = ssub.s32 2048, 2048
      %15 = vsyncadd [#allocation3], %s14
      %s16 = sshll.u32 [#allocation2], 4
      %s17 = int_to_ptr.vmem [resolvable:$true] %s16
      %22 = dma.hbm_to_vmem [thread:$0]  %s0, 2048, %s17, [#allocation3], 512, 512, 32
    $region5: #{tpu_custom_call.1} parent=1 // pred_fallthru
      _
    // Predicated region
    $region6: #{tpu_custom_call.1} parent=1 // pred_check
      _
    $region7: #{tpu_custom_call.1} parent=1 // pred_check_branch
      %24 = sbr.rel (0) target = $region9
    $region8: #{tpu_custom_call.1} parent=1 // pred_region
      %s26 = ssub.s32 2048, 2048
      %27 = vsyncadd [#allocation6], %s26
      %s28 = sshll.u32 [#allocation5], 4
      %s29 = int_to_ptr.vmem [resolvable:$true] %s28
      %34 = dma.hbm_to_vmem [thread:$0]  %s1, 2048, %s29, [#allocation6], 512, 512, 32
    $region9: #{tpu_custom_call.1} parent=1 // pred_fallthru
      _
    // Predicated region
    $region10: #{tpu_custom_call.1} parent=1 // pred_check
      _
    $region11: #{tpu_custom_call.1} parent=1 // pred_check_branch
      %36 = sbr.rel (0) target = $region13
    $region12: #{tpu_custom_call.1} parent=1 // pred_region
      %s38 = ssub.s32 2048, 2048
      %39 = vsyncadd [#allocation6], %s38
      %s40 = sshll.u32 [#allocation7], 4
      %s41 = int_to_ptr.vmem [resolvable:$true] %s40
      %46 = dma.hbm_to_vmem [thread:$0]  %s2, 2048, %s41, [#allocation6], 512, 512, 32
    $region13: #{tpu_custom_call.1} parent=1 // pred_fallthru
      _
    // Predicated region
    $region14: #{tpu_custom_call.1} parent=1 // pred_check
      _
    $region15: #{tpu_custom_call.1} parent=1 // pred_check_branch
      %48 = sbr.rel (0) target = $region17
    $region16: #{tpu_custom_call.1} parent=1 // pred_region
      %49 = dma.done [#allocation3], 2048
    $region17: #{tpu_custom_call.1} parent=1 // pred_fallthru
      _
    // Predicated region
    $region18: #{tpu_custom_call.1} parent=1 // pred_check
      _
    $region19: #{tpu_custom_call.1} parent=1 // pred_check_branch
      %51 = sbr.rel (0) target = $region21
    $region20: #{tpu_custom_call.1} parent=1 // pred_region
      %52 = dma.done [#allocation6], 2048
    $region21: #{tpu_custom_call.1} parent=1 // pred_fallthru
      _
    // Predicated region
    $region22: #{tpu_custom_call.1} parent=1 // pred_check
      _
    $region23: #{tpu_custom_call.1} parent=1 // pred_check_branch
      %54 = sbr.rel (0) target = $region25
    $region24: #{tpu_custom_call.1} parent=1 // pred_region
      %55 = dma.done [#allocation6], 2048
    $region25: #{tpu_custom_call.1} parent=1 // pred_fallthru
      _
    %v56 = vld [vmem:[#allocation2] sm:$0xff]
    %v57 = vld [vmem:[#allocation2 + $0x8] sm:$0xff]
    %v58 = vld [vmem:[#allocation2 + $0x10] sm:$0xff]
    %v59 = vld [vmem:[#allocation2 + $0x18] sm:$0xff]
    %v60 = vld [vmem:[#allocation2 + $0x20] sm:$0xff]
    %v61 = vld [vmem:[#allocation2 + $0x28] sm:$0xff]
    %v62 = vld [vmem:[#allocation2 + $0x30] sm:$0xff]
    %v63 = vld [vmem:[#allocation2 + $0x38] sm:$0xff]
    %v64 = vld [vmem:[#allocation2 + $0x40] sm:$0xff]
    %v65 = vld [vmem:[#allocation2 + $0x48] sm:$0xff]
    %v66 = vld [vmem:[#allocation2 + $0x50] sm:$0xff]
    %v67 = vld [vmem:[#allocation2 + $0x58] sm:$0xff]
    %v68 = vld [vmem:[#allocation2 + $0x60] sm:$0xff]
    %v69 = vld [vmem:[#allocation2 + $0x68] sm:$0xff]
    %v70 = vld [vmem:[#allocation2 + $0x70] sm:$0xff]
    %v71 = vld [vmem:[#allocation2 + $0x78] sm:$0xff]
    %v72 = vld [vmem:[#allocation5] sm:$0xff]
    %v73 = vld [vmem:[#allocation5 + $0x8] sm:$0xff]
    %v74 = vld [vmem:[#allocation5 + $0x10] sm:$0xff]
    %v75 = vld [vmem:[#allocation5 + $0x18] sm:$0xff]
    %v76 = vld [vmem:[#allocation5 + $0x20] sm:$0xff]
    %v77 = vld [vmem:[#allocation5 + $0x28] sm:$0xff]
    %v78 = vld [vmem:[#allocation5 + $0x30] sm:$0xff]
    %v79 = vld [vmem:[#allocation5 + $0x38] sm:$0xff]
    %v80 = vld [vmem:[#allocation5 + $0x40] sm:$0xff]
    %v81 = vld [vmem:[#allocation5 + $0x48] sm:$0xff]
    %v82 = vld [vmem:[#allocation5 + $0x50] sm:$0xff]
    %v83 = vld [vmem:[#allocation5 + $0x58] sm:$0xff]
    %v84 = vld [vmem:[#allocation5 + $0x60] sm:$0xff]
    %v85 = vld [vmem:[#allocation5 + $0x68] sm:$0xff]
    %v86 = vld [vmem:[#allocation5 + $0x70] sm:$0xff]
    %v87 = vld [vmem:[#allocation5 + $0x78] sm:$0xff]
    %v88 = vld [vmem:[#allocation7] sm:$0xff]
    %v89 = vld [vmem:[#allocation7 + $0x8] sm:$0xff]
    %v90 = vld [vmem:[#allocation7 + $0x10] sm:$0xff]
    %v91 = vld [vmem:[#allocation7 + $0x18] sm:$0xff]
    %v92 = vld [vmem:[#allocation7 + $0x20] sm:$0xff]
    %v93 = vld [vmem:[#allocation7 + $0x28] sm:$0xff]
    %v94 = vld [vmem:[#allocation7 + $0x30] sm:$0xff]
    %v95 = vld [vmem:[#allocation7 + $0x38] sm:$0xff]
    %v96 = vld [vmem:[#allocation7 + $0x40] sm:$0xff]
    %v97 = vld [vmem:[#allocation7 + $0x48] sm:$0xff]
    %v98 = vld [vmem:[#allocation7 + $0x50] sm:$0xff]
    %v99 = vld [vmem:[#allocation7 + $0x58] sm:$0xff]
    %v100 = vld [vmem:[#allocation7 + $0x60] sm:$0xff]
    %v101 = vld [vmem:[#allocation7 + $0x68] sm:$0xff]
    %v102 = vld [vmem:[#allocation7 + $0x70] sm:$0xff]
    %v103 = vld [vmem:[#allocation7 + $0x78] sm:$0xff]
    %v104 = vadd.f32 %v56, %v57
    %v105 = vadd.f32 %v104, %v58
    %v106 = vadd.f32 %v105, %v59
    %107 = vadd.xlane.f32.xlu0 %v106
    %v108 = vpop.xlane.xlu0 %107
    %v109 = vadd.f32 %v60, %v61
    %v110 = vadd.f32 %v109, %v62
    %v111 = vadd.f32 %v110, %v63
    %112 = vadd.xlane.f32.xlu0 %v111
    %v113 = vpop.xlane.xlu0 %112
    %v114 = vadd.f32 %v64, %v65
    %v115 = vadd.f32 %v114, %v66
    %v116 = vadd.f32 %v115, %v67
    %117 = vadd.xlane.f32.xlu0 %v116
    %v118 = vpop.xlane.xlu0 %117
    %v119 = vadd.f32 %v68, %v69
    %v120 = vadd.f32 %v119, %v70
    %v121 = vadd.f32 %v120, %v71
    %122 = vadd.xlane.f32.xlu0 %v121
    %v123 = vpop.xlane.xlu0 %122
    %v124 = vmul.f32 %v108, 0.001953125
    %v125 = vmul.f32 %v113, 0.001953125
    %v126 = vmul.f32 %v118, 0.001953125
    %v127 = vmul.f32 %v123, 0.001953125
    %v128 = vsub.f32 %v56, %v124
    %v129 = vsub.f32 %v57, %v124
    %v130 = vsub.f32 %v58, %v124
    %v131 = vsub.f32 %v59, %v124
    %v132 = vsub.f32 %v60, %v125
    %v133 = vsub.f32 %v61, %v125
    %v134 = vsub.f32 %v62, %v125
    %v135 = vsub.f32 %v63, %v125
    %v136 = vsub.f32 %v64, %v126
    %v137 = vsub.f32 %v65, %v126
    %v138 = vsub.f32 %v66, %v126
    %v139 = vsub.f32 %v67, %v126
    %v140 = vsub.f32 %v68, %v127
    %v141 = vsub.f32 %v69, %v127
    %v142 = vsub.f32 %v70, %v127
    %v143 = vsub.f32 %v71, %v127
    %v144 = vmul.f32 %v128, %v128
    %v145 = vmul.f32 %v129, %v129
    %v146 = vmul.f32 %v130, %v130
    %v147 = vmul.f32 %v131, %v131
    %v148 = vmul.f32 %v132, %v132
    %v149 = vmul.f32 %v133, %v133
    %v150 = vmul.f32 %v134, %v134
    %v151 = vmul.f32 %v135, %v135
    %v152 = vmul.f32 %v136, %v136
    %v153 = vmul.f32 %v137, %v137
    %v154 = vmul.f32 %v138, %v138
    %v155 = vmul.f32 %v139, %v139
    %v156 = vmul.f32 %v140, %v140
    %v157 = vmul.f32 %v141, %v141
    %v158 = vmul.f32 %v142, %v142
    %v159 = vmul.f32 %v143, %v143
    %v160 = vadd.f32 %v144, %v145
    %v161 = vadd.f32 %v160, %v146
    %v162 = vadd.f32 %v161, %v147
    %163 = vadd.xlane.f32.xlu0 %v162
    %v164 = vpop.xlane.xlu0 %163
    %v165 = vadd.f32 %v148, %v149
    %v166 = vadd.f32 %v165, %v150
    %v167 = vadd.f32 %v166, %v151
    %168 = vadd.xlane.f32.xlu0 %v167
    %v169 = vpop.xlane.xlu0 %168
    %v170 = vadd.f32 %v152, %v153
    %v171 = vadd.f32 %v170, %v154
    %v172 = vadd.f32 %v171, %v155
    %173 = vadd.xlane.f32.xlu0 %v172
    %v174 = vpop.xlane.xlu0 %173
    %v175 = vadd.f32 %v156, %v157
    %v176 = vadd.f32 %v175, %v158
    %v177 = vadd.f32 %v176, %v159
    %178 = vadd.xlane.f32.xlu0 %v177
    %v179 = vpop.xlane.xlu0 %178
    %v180 = vmul.f32 %v164, 0.0019569471
    %v181 = vmul.f32 %v169, 0.0019569471
    %v182 = vmul.f32 %v174, 0.0019569471
    %v183 = vmul.f32 %v179, 0.0019569471
    %v184 = vrsqrt.pop %v180
    %v185 = vmul.f32 %v180, %v184
    %vm186 = vcmp.eq.f32.partialorder %v180, inf
    %v187 = vsel %vm186, %v180, %v185
    %vm188 = vcmp.eq.f32.partialorder %v180, 0.0
    %v189 = vand.u32 %v180, 2147483648
    %v190 = vsel %vm188, %v189, %v187
    %v191 = vrsqrt.pop %v181
    %v192 = vmul.f32 %v181, %v191
    %vm193 = vcmp.eq.f32.partialorder %v181, inf
    %v194 = vsel %vm193, %v181, %v192
    %vm195 = vcmp.eq.f32.partialorder %v181, 0.0
    %v196 = vand.u32 %v181, 2147483648
    %v197 = vsel %vm195, %v196, %v194
    %v198 = vrsqrt.pop %v182
    %v199 = vmul.f32 %v182, %v198
    %vm200 = vcmp.eq.f32.partialorder %v182, inf
    %v201 = vsel %vm200, %v182, %v199
    %vm202 = vcmp.eq.f32.partialorder %v182, 0.0
    %v203 = vand.u32 %v182, 2147483648
    %v204 = vsel %vm202, %v203, %v201
    %v205 = vrsqrt.pop %v183
    %v206 = vmul.f32 %v183, %v205
    %vm207 = vcmp.eq.f32.partialorder %v183, inf
    %v208 = vsel %vm207, %v183, %v206
    %vm209 = vcmp.eq.f32.partialorder %v183, 0.0
    %v210 = vand.u32 %v183, 2147483648
    %v211 = vsel %vm209, %v210, %v208
    %v212 = vadd.f32 %v190, 1e-10
    %v213 = vadd.f32 %v197, 1e-10
    %v214 = vadd.f32 %v204, 1e-10
    %v215 = vadd.f32 %v211, 1e-10
    %v216 = vrcp.pop %v212
    %v217 = vmul.f32 1.0, %v216
    %v218 = vrcp.pop %v213
    %v219 = vmul.f32 1.0, %v218
    %v220 = vrcp.pop %v214
    %v221 = vmul.f32 1.0, %v220
    %v222 = vrcp.pop %v215
    %v223 = vmul.f32 1.0, %v222
    %v224 = vmul.f32 %v72, %v217
    %v225 = vmul.f32 %v73, %v217
    %v226 = vmul.f32 %v74, %v217
    %v227 = vmul.f32 %v75, %v217
    %v228 = vmul.f32 %v76, %v219
    %v229 = vmul.f32 %v77, %v219
    %v230 = vmul.f32 %v78, %v219
    %v231 = vmul.f32 %v79, %v219
    %v232 = vmul.f32 %v80, %v221
    %v233 = vmul.f32 %v81, %v221
    %v234 = vmul.f32 %v82, %v221
    %v235 = vmul.f32 %v83, %v221
    %v236 = vmul.f32 %v84, %v223
    %v237 = vmul.f32 %v85, %v223
    %v238 = vmul.f32 %v86, %v223
    %v239 = vmul.f32 %v87, %v223
    %v240 = vadd.f32 %v224, 1.0
    %v241 = vadd.f32 %v225, 1.0
    %v242 = vadd.f32 %v226, 1.0
    %v243 = vadd.f32 %v227, 1.0
    %v244 = vadd.f32 %v228, 1.0
    %v245 = vadd.f32 %v229, 1.0
    %v246 = vadd.f32 %v230, 1.0
    %v247 = vadd.f32 %v231, 1.0
    %v248 = vadd.f32 %v232, 1.0
    %v249 = vadd.f32 %v233, 1.0
    %v250 = vadd.f32 %v234, 1.0
    %v251 = vadd.f32 %v235, 1.0
    %v252 = vadd.f32 %v236, 1.0
    %v253 = vadd.f32 %v237, 1.0
    %v254 = vadd.f32 %v238, 1.0
    %v255 = vadd.f32 %v239, 1.0
    %v256 = vmul.f32 %v56, %v240
    %v257 = vmul.f32 %v57, %v241
    %v258 = vmul.f32 %v58, %v242
    %v259 = vmul.f32 %v59, %v243
    %v260 = vmul.f32 %v60, %v244
    %v261 = vmul.f32 %v61, %v245
    %v262 = vmul.f32 %v62, %v246
    %v263 = vmul.f32 %v63, %v247
    %v264 = vmul.f32 %v64, %v248
    %v265 = vmul.f32 %v65, %v249
    %v266 = vmul.f32 %v66, %v250
    %v267 = vmul.f32 %v67, %v251
    %v268 = vmul.f32 %v68, %v252
    %v269 = vmul.f32 %v69, %v253
    %v270 = vmul.f32 %v70, %v254
    %v271 = vmul.f32 %v71, %v255
    %v272 = vmul.f32 %v124, %v224
    %v273 = vmul.f32 %v124, %v225
    %v274 = vmul.f32 %v124, %v226
    %v275 = vmul.f32 %v124, %v227
    %v276 = vmul.f32 %v125, %v228
    %v277 = vmul.f32 %v125, %v229
    %v278 = vmul.f32 %v125, %v230
    %v279 = vmul.f32 %v125, %v231
    %v280 = vmul.f32 %v126, %v232
    %v281 = vmul.f32 %v126, %v233
    %v282 = vmul.f32 %v126, %v234
    %v283 = vmul.f32 %v126, %v235
    %v284 = vmul.f32 %v127, %v236
    %v285 = vmul.f32 %v127, %v237
    %v286 = vmul.f32 %v127, %v238
    %v287 = vmul.f32 %v127, %v239
    %v288 = vsub.f32 %v88, %v272
    %v289 = vsub.f32 %v89, %v273
    %v290 = vsub.f32 %v90, %v274
    %v291 = vsub.f32 %v91, %v275
    %v292 = vsub.f32 %v92, %v276
    %v293 = vsub.f32 %v93, %v277
    %v294 = vsub.f32 %v94, %v278
    %v295 = vsub.f32 %v95, %v279
    %v296 = vsub.f32 %v96, %v280
    %v297 = vsub.f32 %v97, %v281
    %v298 = vsub.f32 %v98, %v282
    %v299 = vsub.f32 %v99, %v283
    %v300 = vsub.f32 %v100, %v284
    %v301 = vsub.f32 %v101, %v285
    %v302 = vsub.f32 %v102, %v286
    %v303 = vsub.f32 %v103, %v287
    %v304 = vadd.f32 %v256, %v288
    %v305 = vadd.f32 %v257, %v289
    %v306 = vadd.f32 %v258, %v290
    %v307 = vadd.f32 %v259, %v291
    %v308 = vadd.f32 %v260, %v292
    %v309 = vadd.f32 %v261, %v293
    %v310 = vadd.f32 %v262, %v294
    %v311 = vadd.f32 %v263, %v295
    %v312 = vadd.f32 %v264, %v296
    %v313 = vadd.f32 %v265, %v297
    %v314 = vadd.f32 %v266, %v298
    %v315 = vadd.f32 %v267, %v299
    %v316 = vadd.f32 %v268, %v300
    %v317 = vadd.f32 %v269, %v301
    %v318 = vadd.f32 %v270, %v302
    %v319 = vadd.f32 %v271, %v303
    %vm320 = vcmp.ge.f32.partialorder %v304, 0.0
    %vm321 = vcmp.ge.f32.partialorder %v305, 0.0
    %vm322 = vcmp.ge.f32.partialorder %v306, 0.0
    %vm323 = vcmp.ge.f32.partialorder %v307, 0.0
    %vm324 = vcmp.ge.f32.partialorder %v308, 0.0
    %vm325 = vcmp.ge.f32.partialorder %v309, 0.0
    %vm326 = vcmp.ge.f32.partialorder %v310, 0.0
    %vm327 = vcmp.ge.f32.partialorder %v311, 0.0
    %vm328 = vcmp.ge.f32.partialorder %v312, 0.0
    %vm329 = vcmp.ge.f32.partialorder %v313, 0.0
    %vm330 = vcmp.ge.f32.partialorder %v314, 0.0
    %vm331 = vcmp.ge.f32.partialorder %v315, 0.0
    %vm332 = vcmp.ge.f32.partialorder %v316, 0.0
    %vm333 = vcmp.ge.f32.partialorder %v317, 0.0
    %vm334 = vcmp.ge.f32.partialorder %v318, 0.0
    %vm335 = vcmp.ge.f32.partialorder %v319, 0.0
    %v336 = vsel %vm320, %v56, 0.0
    %v337 = vsel %vm321, %v57, 0.0
    %v338 = vsel %vm322, %v58, 0.0
    %v339 = vsel %vm323, %v59, 0.0
    %v340 = vsel %vm324, %v60, 0.0
    %v341 = vsel %vm325, %v61, 0.0
    %v342 = vsel %vm326, %v62, 0.0
    %v343 = vsel %vm327, %v63, 0.0
    %v344 = vsel %vm328, %v64, 0.0
    %v345 = vsel %vm329, %v65, 0.0
    %v346 = vsel %vm330, %v66, 0.0
    %v347 = vsel %vm331, %v67, 0.0
    %v348 = vsel %vm332, %v68, 0.0
    %v349 = vsel %vm333, %v69, 0.0
    %v350 = vsel %vm334, %v70, 0.0
    %v351 = vsel %vm335, %v71, 0.0
    %352 = vst [vmem:[#allocation8] sm:$0xff] %v336
    %353 = vst [vmem:[#allocation8 + $0x8] sm:$0xff] %v337
    %354 = vst [vmem:[#allocation8 + $0x10] sm:$0xff] %v338
    %355 = vst [vmem:[#allocation8 + $0x18] sm:$0xff] %v339
    %356 = vst [vmem:[#allocation8 + $0x20] sm:$0xff] %v340
    %357 = vst [vmem:[#allocation8 + $0x28] sm:$0xff] %v341
    %358 = vst [vmem:[#allocation8 + $0x30] sm:$0xff] %v342
    %359 = vst [vmem:[#allocation8 + $0x38] sm:$0xff] %v343
    %360 = vst [vmem:[#allocation8 + $0x40] sm:$0xff] %v344
    %361 = vst [vmem:[#allocation8 + $0x48] sm:$0xff] %v345
    %362 = vst [vmem:[#allocation8 + $0x50] sm:$0xff] %v346
    %363 = vst [vmem:[#allocation8 + $0x58] sm:$0xff] %v347
    %364 = vst [vmem:[#allocation8 + $0x60] sm:$0xff] %v348
    %365 = vst [vmem:[#allocation8 + $0x68] sm:$0xff] %v349
    %366 = vst [vmem:[#allocation8 + $0x70] sm:$0xff] %v350
    %367 = vst [vmem:[#allocation8 + $0x78] sm:$0xff] %v351
    // Predicated region
    $region26: #{tpu_custom_call.1} parent=1 // pred_check
      _
    $region27: #{tpu_custom_call.1} parent=1 // pred_check_branch
      %369 = sbr.rel (0) target = $region29
    $region28: #{tpu_custom_call.1} parent=1 // pred_region
      %s371 = ssub.s32 2048, 2048
      %372 = vsyncadd [#allocation4], %s371
      %s373 = sshll.u32 [#allocation8], 4
      %s374 = int_to_ptr.vmem [resolvable:$true] %s373
      %379 = dma.vmem_to_hbm [thread:$0]  %s374, 2048, %s3, [#allocation4], 512, 512, 32
    $region29: #{tpu_custom_call.1} parent=1 // pred_fallthru
      _
    // Predicated region
    $region30: #{tpu_custom_call.1} parent=1 // pred_check
      _
    $region31: #{tpu_custom_call.1} parent=1 // pred_check_branch
      %381 = sbr.rel (0) target = $region33
    $region32: #{tpu_custom_call.1} parent=1 // pred_region
      %382 = dma.done [#allocation4], 2048
    $region33: #{tpu_custom_call.1} parent=1 // pred_fallthru
      _
    %383 = vsyncpa [#allocation3], 1
    %384 = vsyncpa [#allocation6], 1
    %385 = vsyncpa [#allocation4], 1

</llo_original>
